<compile_context>
chip_gen: v5e
topology: v5e:2x2
jax: 0.10.0
libtpu: 0.0.40
codegen_flags: <defaults>
</compile_context>

<pallas_src>
import jax
import jax.numpy as jnp
from jax.experimental import pallas as pl
from jax.experimental.pallas import tpu as pltpu


def _fisher_penalty_kernel(x_ref, w_ref, b_ref, gum_ref,
                           res_ref, labels_ref,
                           logits_acc, gx_acc):
    h = pl.program_id(0)
    nh = pl.num_programs(0)

    @pl.when(h == 0)
    def _init():
        logits_acc[...] = jnp.zeros_like(logits_acc)
        gx_acc[...] = jnp.zeros_like(gx_acc)

    x_t = x_ref[...]                      # (B, TH)  native (bf16) dtype -> MXU
    w_t = w_ref[...]                      # (TH, C)  native (bf16) dtype -> MXU

    # Accumulate logits and the batch Gram matrix of x in f32.
    logits_acc[...] += jnp.dot(x_t, w_t, preferred_element_type=jnp.float32)
    gx_acc[...] += jax.lax.dot_general(
        x_t, x_t, dimension_numbers=(((1,), (1,)), ((), ())),
        preferred_element_type=jnp.float32)                           # (B, B)

    @pl.when(h == nh - 1)
    def _finalize():
        batch, num_classes = logits_acc.shape
        logits = logits_acc[...] + b_ref[...].astype(jnp.float32)     # (B, C)

        # ---- Categorical sample = argmax(logits + gumbel), first-winner ties
        z = logits + gum_ref[...]
        z_max = jnp.max(z, axis=-1, keepdims=True)
        iota = jax.lax.broadcasted_iota(jnp.int32, (batch, num_classes), 1)
        winner = jnp.min(jnp.where(z == z_max, iota, num_classes),
                         axis=-1, keepdims=True)                      # (B, 1)
        labels_ref[...] = winner
        onehot = (iota == winner).astype(jnp.float32)                 # (B, C)

        # ---- softmax (exact division: epilogue is tiny, accuracy matters) --
        l_max = jnp.max(logits, axis=-1, keepdims=True)
        e = jnp.exp(logits - l_max)
        probs = e / jnp.sum(e, axis=-1, keepdims=True)

        # ---- d(mean CE)/d(logits) ----
        delta = (probs - onehot) * (1.0 / batch)                      # (B, C)

        # ---- Fisher traces ----
        # sum(grad_W^2) = sum((x x^T) * (delta delta^T))   (Gram identity)
        gd = jax.lax.dot_general(
            delta, delta, dimension_numbers=(((1,), (1,)), ((), ())),
            preferred_element_type=jnp.float32)                       # (B, B)
        tw = jnp.sum(gx_acc[...] * gd, keepdims=True)                 # (1, 1)
        # grad_b = column sums of delta: sum over batch FIRST, square after
        gb = jnp.sum(delta, axis=0, keepdims=True)                    # (1, C)
        tb = jnp.sum(gb * gb, keepdims=True)                          # (1, 1)

        # single lane-dense result vector: [tw, tb, 0, ...]
        lane = jax.lax.broadcasted_iota(jnp.int32, (1, 128), 1)
        res_ref[...] = jnp.where(lane == 0, tw,
                                 jnp.where(lane == 1, tb, 0.0))


def _vmem_budget_bytes():
    """Generation-aware VMEM budget + physical capacity (safe fallback)."""
    try:
        cap = int(pltpu.get_tpu_info().vmem_capacity_bytes)
    except Exception:
        cap = 64 * 1024 * 1024          # conservative (v7x physical size)
    # ~60% headroom budget: v7x(64MiB)->~38MiB, v5e/v6e(128MiB)->~77MiB
    return (cap * 3) // 5, cap


def _working_set_bytes(B, th, C, itemsize):
    # double-buffered x / W tiles (native dtype) + resident bias / gumbel
    # + f32 logits & Gram accumulators + outputs
    return (2 * (B * th + th * C) * itemsize
            + (C + B * C) * 4
            + (B * C + B * B) * 4
            + (128 + B) * 4)


def _pick_hidden_tile(B, H, C, itemsize, budget):
    """Pick the H-tile: fast path (full H, grid=(1,)) if it fits, otherwise
    the largest 128-aligned divisor tile that fits.  H is pre-padded to a
    multiple of 128 by the wrapper, so 128 always divides H here."""
    need_full = _working_set_bytes(B, H, C, itemsize)
    if need_full <= budget:
        return H, need_full                 # single long-K matmul, no tiling
    for th in (4096, 2048, 1024, 512, 256, 128):
        if H % th == 0:
            need = _working_set_bytes(B, th, C, itemsize)
            if need <= budget:
                return th, need
    return 128, _working_set_bytes(B, 128, C, itemsize)


def fisher_penalty(x, w, b, key):
    """Fused Fisher-trace penalty for a linear classifier head.

    Returns (overall_trace, traces_dict, labels); labels are the Categorical
    samples (int32 indices) drawn via Gumbel-max inside the kernel.
    """
    B, H = x.shape
    C = w.shape[1]

    # NOTE: the Gram-trace identity is exact only because the batch dimension
    # is never tiled.  Do not tile B.

    # Pad H to a 128 multiple so any tile choice (including the guarded
    # fallback) yields legal, VMEM-bounded blocks.  Zero columns of x / zero
    # rows of W contribute nothing to logits or to the Gram matrix.
    H_pad = ((H + 127) // 128) * 128
    if H_pad != H:
        x = jnp.pad(x, ((0, 0), (0, H_pad - H)))
        w = jnp.pad(w, ((0, H_pad - H), (0, 0)))

    b2d = b.reshape(1, C).astype(jnp.float32)
    gum = jax.random.gumbel(key, (B, C), dtype=jnp.float32)

    budget, capacity = _vmem_budget_bytes()
    th, need = _pick_hidden_tile(B, H_pad, C, x.dtype.itemsize, budget)
    grid = (H_pad // th,)
    vmem_limit = int(min(capacity, max(need * 5 // 4, 16 * 1024 * 1024)))

    grid_spec = pltpu.PrefetchScalarGridSpec(
        num_scalar_prefetch=0,
        grid=grid,
        in_specs=[
            pl.BlockSpec((B, th), lambda h: (0, h)),      # x tile
            pl.BlockSpec((th, C), lambda h: (h, 0)),      # W tile
            pl.BlockSpec((1, C), lambda h: (0, 0)),       # bias (resident)
            pl.BlockSpec((B, C), lambda h: (0, 0)),       # gumbel (resident)
        ],
        out_specs=[
            pl.BlockSpec((1, 128), lambda h: (0, 0)),     # [tw, tb, 0, ...]
            pl.BlockSpec((B, 1), lambda h: (0, 0)),       # sampled labels
        ],
        scratch_shapes=[
            pltpu.VMEM((B, C), jnp.float32),              # logits accumulator
            pltpu.VMEM((B, B), jnp.float32),              # Gram(x) accumulator
        ],
    )

    res, labels = pl.pallas_call(
        _fisher_penalty_kernel,
        out_shape=(jax.ShapeDtypeStruct((1, 128), jnp.float32),
                   jax.ShapeDtypeStruct((B, 1), jnp.int32)),
        grid_spec=grid_spec,
        compiler_params=pltpu.CompilerParams(
            dimension_semantics=("arbitrary",),           # H is a reduction
            vmem_limit_bytes=vmem_limit,
        ),
    )(x, w, b2d, gum)

    tw = res[0, 0]
    tb = res[0, 1]
    overall_trace = tw + tb
    traces = {"linear.weight": tw, "linear.bias": tb}
    return overall_trace, traces, labels[:, 0]


def _reference(x, w, b, labels):
    """Pure-JAX autodiff reference, given the kernel's sampled labels."""
    xf = x.astype(jnp.float32)
    oh = jax.nn.one_hot(labels, w.shape[1], dtype=jnp.float32)

    def loss_fn(w_, b_):
        logits = jnp.dot(xf, w_, precision=jax.lax.Precision.HIGHEST) + b_
        log_z = jax.scipy.special.logsumexp(logits, axis=-1)
        ll = jnp.sum(oh * logits, axis=-1)
        return jnp.mean(log_z - ll)

    gw, gb = jax.grad(loss_fn, argnums=(0, 1))(
        w.astype(jnp.float32), b.astype(jnp.float32))
    return jnp.sum(gw ** 2), jnp.sum(gb ** 2)


if __name__ == "__main__":
    # small but tile-aligned shapes: batch=16, hidden=1024, num_classes=128
    B, H, C = 16, 1024, 128
    key = jax.random.PRNGKey(0)
    kx, kw, kb, ks = jax.random.split(key, 4)

    x = jax.random.normal(kx, (B, H), dtype=jnp.float32).astype(jnp.bfloat16)
    w = (jax.random.normal(kw, (H, C), dtype=jnp.float32) * 0.05
         ).astype(jnp.bfloat16)
    b = jax.random.normal(kb, (C,), dtype=jnp.float32) * 0.01

    overall_trace, traces, labels = fisher_penalty(x, w, b, ks)
    jax.block_until_ready(overall_trace)

    # correctness check against pure-JAX autodiff using the SAME sampled
    # labels; tolerance accounts for bf16 MXU inputs (f32 accumulation).
    ref_tw, ref_tb = _reference(x, w, b, labels)
    ref_overall = ref_tw + ref_tb
    ok = (bool(jnp.all((labels >= 0) & (labels < C)))          # valid samples
          and jnp.allclose(traces["linear.weight"], ref_tw, rtol=1e-2, atol=1e-9)
          and jnp.allclose(traces["linear.bias"], ref_tb, rtol=1e-2, atol=1e-9)
          and jnp.allclose(overall_trace, ref_overall, rtol=1e-2, atol=1e-9))
    assert ok, ((float(overall_trace), float(ref_overall)),
                {k: float(v) for k, v in traces.items()},
                (float(ref_tw), float(ref_tb)))

    print("KERNEL_OK")
</pallas_src>

<mosaic_0001>
module attributes {stable_mosaic.version = 11 : i64} {
  func.func @_fisher_penalty_kernel(%arg0: i32, %arg1: memref<16x1024xbf16, #tpu.memory_space<vmem>>, %arg2: memref<1024x128xbf16, #tpu.memory_space<vmem>>, %arg3: memref<1x128xf32, #tpu.memory_space<vmem>>, %arg4: memref<16x128xf32, #tpu.memory_space<vmem>>, %arg5: memref<1x128xf32, #tpu.memory_space<vmem>>, %arg6: memref<16x1xi32, #tpu.memory_space<vmem>>, %arg7: memref<16x128xf32, #tpu.memory_space<vmem>>, %arg8: memref<16x16xf32, #tpu.memory_space<vmem>>) attributes {dimension_semantics = [#tpu.dimension_semantics<arbitrary>], iteration_bounds = array<i64: 1>, scalar_prefetch = 0 : i64, scratch_operands = 2 : i64, tpu.core_type = #tpu.core_type<tc>, window_params = [{transform_indices = @transform_0, window_bounds = array<i64: 16, 1024>}, {transform_indices = @transform_1, window_bounds = array<i64: 1024, 128>}, {pipeline_mode = #tpu.pipeline_mode<synchronous>, transform_indices = @transform_2, window_bounds = array<i64: 1, 128>}, {pipeline_mode = #tpu.pipeline_mode<synchronous>, transform_indices = @transform_3, window_bounds = array<i64: 16, 128>}, {pipeline_mode = #tpu.pipeline_mode<synchronous>, transform_indices = @transform_4, window_bounds = array<i64: 1, 128>}, {pipeline_mode = #tpu.pipeline_mode<synchronous>, transform_indices = @transform_5, window_bounds = array<i64: 16, 1>}]} {
    %c0_i32 = arith.constant 0 : i32
    %0 = arith.cmpi eq, %arg0, %c0_i32 : i32
    %1 = arith.extui %0 : i1 to i32
    %c0_i32_0 = arith.constant 0 : i32
    %2 = arith.cmpi ne, %1, %c0_i32_0 : i32
    scf.if %2 {
      %cst_15 = arith.constant 0.000000e+00 : f32
      %16 = vector.broadcast %cst_15 : f32 to vector<16x128xf32>
      %c0_16 = arith.constant 0 : index
      %c0_17 = arith.constant 0 : index
      %17 = vector.load %arg7[%c0_16, %c0_17] : memref<16x128xf32, #tpu.memory_space<vmem>>, vector<16x128xf32>
      tpu.vector_store %arg7[%c0_16, %c0_17], %16 {strides = array<i32>} : memref<16x128xf32, #tpu.memory_space<vmem>>, vector<16x128xf32>,
      %cst_18 = arith.constant 0.000000e+00 : f32
      %18 = vector.broadcast %cst_18 : f32 to vector<16x16xf32>
      %c0_19 = arith.constant 0 : index
      %c0_20 = arith.constant 0 : index
      %19 = vector.load %arg8[%c0_19, %c0_20] : memref<16x16xf32, #tpu.memory_space<vmem>>, vector<16x16xf32>
      tpu.vector_store %arg8[%c0_19, %c0_20], %18 {strides = array<i32>} : memref<16x16xf32, #tpu.memory_space<vmem>>, vector<16x16xf32>,
    } else {
    }
    %c0 = arith.constant 0 : index
    %c0_1 = arith.constant 0 : index
    %3 = vector.load %arg1[%c0, %c0_1] : memref<16x1024xbf16, #tpu.memory_space<vmem>>, vector<16x1024xbf16>
    %c0_2 = arith.constant 0 : index
    %c0_3 = arith.constant 0 : index
    %4 = vector.load %arg2[%c0_2, %c0_3] : memref<1024x128xbf16, #tpu.memory_space<vmem>>, vector<1024x128xbf16>
    %c0_4 = arith.constant 0 : index
    %c0_5 = arith.constant 0 : index
    %5 = vector.load %arg7[%c0_4, %c0_5] : memref<16x128xf32, #tpu.memory_space<vmem>>, vector<16x128xf32>
    %cst = arith.constant dense<0.000000e+00> : vector<16x128xf32>
    %6 = tpu.matmul %3, %4, %cst {dimension_numbers = #tpu.dot_dimension_numbers<[1], [0], [0], [1], [0, 0, 1, 1], [], []>} : vector<16x1024xbf16>, vector<1024x128xbf16>, vector<16x128xf32> -> vector<16x128xf32>
    %7 = arith.addf %5, %6 : vector<16x128xf32>
    %c0_6 = arith.constant 0 : index
    %c0_7 = arith.constant 0 : index
    %8 = vector.load %arg7[%c0_6, %c0_7] : memref<16x128xf32, #tpu.memory_space<vmem>>, vector<16x128xf32>
    tpu.vector_store %arg7[%c0_6, %c0_7], %7 {strides = array<i32>} : memref<16x128xf32, #tpu.memory_space<vmem>>, vector<16x128xf32>,
    %c0_8 = arith.constant 0 : index
    %c0_9 = arith.constant 0 : index
    %9 = vector.load %arg8[%c0_8, %c0_9] : memref<16x16xf32, #tpu.memory_space<vmem>>, vector<16x16xf32>
    %cst_10 = arith.constant dense<0.000000e+00> : vector<16x16xf32>
    %10 = tpu.matmul %3, %3, %cst_10 {dimension_numbers = #tpu.dot_dimension_numbers<[1], [1], [0], [0], [0, 0, 1, 0], [], []>} : vector<16x1024xbf16>, vector<16x1024xbf16>, vector<16x16xf32> -> vector<16x16xf32>
    %11 = arith.addf %9, %10 : vector<16x16xf32>
    %c0_11 = arith.constant 0 : index
    %c0_12 = arith.constant 0 : index
    %12 = vector.load %arg8[%c0_11, %c0_12] : memref<16x16xf32, #tpu.memory_space<vmem>>, vector<16x16xf32>
    tpu.vector_store %arg8[%c0_11, %c0_12], %11 {strides = array<i32>} : memref<16x16xf32, #tpu.memory_space<vmem>>, vector<16x16xf32>,
    %c0_i32_13 = arith.constant 0 : i32
    %13 = arith.cmpi eq, %arg0, %c0_i32_13 : i32
    %14 = arith.extui %13 : i1 to i32
    %c0_i32_14 = arith.constant 0 : i32
    %15 = arith.cmpi ne, %14, %c0_i32_14 : i32
    scf.if %15 {
      %c0_15 = arith.constant 0 : index
      %c0_16 = arith.constant 0 : index
      %16 = vector.load %arg7[%c0_15, %c0_16] : memref<16x128xf32, #tpu.memory_space<vmem>>, vector<16x128xf32>
      %c0_17 = arith.constant 0 : index
      %c0_18 = arith.constant 0 : index
      %17 = vector.load %arg3[%c0_17, %c0_18] : memref<1x128xf32, #tpu.memory_space<vmem>>, vector<1x128xf32>
      %18 = vector.broadcast %17 : vector<1x128xf32> to vector<16x128xf32>
      %19 = arith.addf %16, %18 : vector<16x128xf32>
      %c0_19 = arith.constant 0 : index
      %c0_20 = arith.constant 0 : index
      %20 = vector.load %arg4[%c0_19, %c0_20] : memref<16x128xf32, #tpu.memory_space<vmem>>, vector<16x128xf32>
      %21 = arith.addf %19, %20 : vector<16x128xf32>
      %cst_21 = arith.constant dense<0xFF800000> : vector<16xf32>
      %22 = vector.multi_reduction <maximumf>, %21, %cst_21 [1] : vector<16x128xf32> to vector<16xf32>
      %23 = vector.shape_cast %22 : vector<16xf32> to vector<16x1xf32>
      %24 = tpu.iota {dimensions = array<i32: 1>} : vector<16x128xi32>
      %25 = vector.broadcast %23 : vector<16x1xf32> to vector<16x128xf32>
      %26 = arith.cmpf oeq, %21, %25 : vector<16x128xf32>
      %c128_i32 = arith.constant 128 : i32
      %27 = vector.broadcast %c128_i32 : i32 to vector<16x128xi32>
      %28 = arith.select %26, %24, %27 : vector<16x128xi1>, vector<16x128xi32>
      %cst_22 = arith.constant dense<2147483647> : vector<16xi32>
      %29 = vector.multi_reduction <minsi>, %28, %cst_22 [1] : vector<16x128xi32> to vector<16xi32>
      %30 = vector.shape_cast %29 : vector<16xi32> to vector<16x1xi32>
      %c0_23 = arith.constant 0 : index
      %c0_24 = arith.constant 0 : index
      %31 = vector.load %arg6[%c0_23, %c0_24] : memref<16x1xi32, #tpu.memory_space<vmem>>, vector<16x1xi32>
      tpu.vector_store %arg6[%c0_23, %c0_24], %30 {strides = array<i32>} : memref<16x1xi32, #tpu.memory_space<vmem>>, vector<16x1xi32>,
      %32 = vector.broadcast %30 : vector<16x1xi32> to vector<16x128xi32>
      %33 = arith.cmpi eq, %24, %32 : vector<16x128xi32>
      %34 = arith.extui %33 : vector<16x128xi1> to vector<16x128xi32>
      %35 = arith.sitofp %34 : vector<16x128xi32> to vector<16x128xf32>
      %cst_25 = arith.constant dense<0xFF800000> : vector<16xf32>
      %36 = vector.multi_reduction <maximumf>, %19, %cst_25 [1] : vector<16x128xf32> to vector<16xf32>
      %37 = vector.shape_cast %36 : vector<16xf32> to vector<16x1xf32>
      %38 = vector.broadcast %37 : vector<16x1xf32> to vector<16x128xf32>
      %39 = arith.subf %19, %38 : vector<16x128xf32>
      %40 = math.exp %39 : vector<16x128xf32>
      %cst_26 = arith.constant dense<0.000000e+00> : vector<16xf32>
      %41 = vector.multi_reduction <add>, %40, %cst_26 [1] : vector<16x128xf32> to vector<16xf32>
      %42 = vector.shape_cast %41 : vector<16xf32> to vector<16x1xf32>
      %43 = vector.broadcast %42 : vector<16x1xf32> to vector<16x128xf32>
      %44 = arith.divf %40, %43 : vector<16x128xf32>
      %45 = arith.subf %44, %35 : vector<16x128xf32>
      %cst_27 = arith.constant 6.250000e-02 : f32
      %46 = vector.broadcast %cst_27 : f32 to vector<16x128xf32>
      %47 = arith.mulf %45, %46 : vector<16x128xf32>
      %cst_28 = arith.constant dense<0.000000e+00> : vector<16x16xf32>
      %48 = tpu.matmul %47, %47, %cst_28 {dimension_numbers = #tpu.dot_dimension_numbers<[1], [1], [0], [0], [0, 0, 1, 0], [], []>} : vector<16x128xf32>, vector<16x128xf32>, vector<16x16xf32> -> vector<16x16xf32>
      %c0_29 = arith.constant 0 : index
      %c0_30 = arith.constant 0 : index
      %49 = vector.load %arg8[%c0_29, %c0_30] : memref<16x16xf32, #tpu.memory_space<vmem>>, vector<16x16xf32>
      %50 = arith.mulf %49, %48 : vector<16x16xf32>
      %51 = vector.shape_cast %50 : vector<16x16xf32> to vector<1x16x16xf32>
      %cst_31 = arith.constant dense<0.000000e+00> : vector<1xf32>
      %52 = vector.multi_reduction <add>, %51, %cst_31 [1, 2] : vector<1x16x16xf32> to vector<1xf32>
      %53 = vector.shape_cast %52 : vector<1xf32> to vector<1x1x1xf32>
      %54 = vector.extract %53[0, 0, 0] : f32 from vector<1x1x1xf32>
      %55 = vector.broadcast %54 : f32 to vector<1x1xf32>
      %cst_32 = arith.constant dense<0.000000e+00> : vector<128xf32>
      %56 = vector.multi_reduction <add>, %47, %cst_32 [0] : vector<16x128xf32> to vector<128xf32>
      %57 = vector.shape_cast %56 : vector<128xf32> to vector<1x128xf32>
      %58 = arith.mulf %57, %57 : vector<1x128xf32>
      %59 = vector.shape_cast %58 : vector<1x128xf32> to vector<1x1x128xf32>
      %cst_33 = arith.constant dense<0.000000e+00> : vector<1xf32>
      %60 = vector.multi_reduction <add>, %59, %cst_33 [1, 2] : vector<1x1x128xf32> to vector<1xf32>
      %61 = vector.shape_cast %60 : vector<1xf32> to vector<1x1x1xf32>
      %62 = vector.extract %61[0, 0, 0] : f32 from vector<1x1x1xf32>
      %63 = vector.broadcast %62 : f32 to vector<1x1xf32>
      %64 = tpu.iota {dimensions = array<i32: 1>} : vector<1x128xi32>
      %c0_i32_34 = arith.constant 0 : i32
      %65 = vector.broadcast %c0_i32_34 : i32 to vector<1x128xi32>
      %66 = arith.cmpi eq, %64, %65 : vector<1x128xi32>
      %c1_i32 = arith.constant 1 : i32
      %67 = vector.broadcast %c1_i32 : i32 to vector<1x128xi32>
      %68 = arith.cmpi eq, %64, %67 : vector<1x128xi32>
      %cst_35 = arith.constant 0.000000e+00 : f32
      %69 = vector.shape_cast %63 : vector<1x1xf32> to vector<1x1xf32>
      %70 = vector.broadcast %69 : vector<1x1xf32> to vector<1x128xf32>
      %71 = vector.broadcast %cst_35 : f32 to vector<1x128xf32>
      %72 = arith.select %68, %70, %71 : vector<1x128xi1>, vector<1x128xf32>
      %73 = vector.shape_cast %55 : vector<1x1xf32> to vector<1x1xf32>
      %74 = vector.broadcast %73 : vector<1x1xf32> to vector<1x128xf32>
      %75 = arith.select %66, %74, %72 : vector<1x128xi1>, vector<1x128xf32>
      %c0_36 = arith.constant 0 : index
      %c0_37 = arith.constant 0 : index
      %76 = vector.load %arg5[%c0_36, %c0_37] : memref<1x128xf32, #tpu.memory_space<vmem>>, vector<1x128xf32>
      tpu.vector_store %arg5[%c0_36, %c0_37], %75 {strides = array<i32>} : memref<1x128xf32, #tpu.memory_space<vmem>>, vector<1x128xf32>,
    } else {
    }
    return
  }
  func.func @transform_0(%arg0: i32) -> (i32, i32) {
    %c0_i32 = arith.constant 0 : i32
    %c0_i32_0 = arith.constant 0 : i32
    return %c0_i32, %arg0 : i32, i32
  }
  func.func @transform_1(%arg0: i32) -> (i32, i32) {
    %c0_i32 = arith.constant 0 : i32
    %c0_i32_0 = arith.constant 0 : i32
    return %arg0, %c0_i32 : i32, i32
  }
  func.func @transform_2(%arg0: i32) -> (i32, i32) {
    %c0_i32 = arith.constant 0 : i32
    %c0_i32_0 = arith.constant 0 : i32
    %c0_i32_1 = arith.constant 0 : i32
    return %c0_i32, %c0_i32_0 : i32, i32
  }
  func.func @transform_3(%arg0: i32) -> (i32, i32) {
    %c0_i32 = arith.constant 0 : i32
    %c0_i32_0 = arith.constant 0 : i32
    %c0_i32_1 = arith.constant 0 : i32
    return %c0_i32, %c0_i32_0 : i32, i32
  }
  func.func @transform_4(%arg0: i32) -> (i32, i32) {
    %c0_i32 = arith.constant 0 : i32
    %c0_i32_0 = arith.constant 0 : i32
    %c0_i32_1 = arith.constant 0 : i32
    return %c0_i32, %c0_i32_0 : i32, i32
  }
  func.func @transform_5(%arg0: i32) -> (i32, i32) {
    %c0_i32 = arith.constant 0 : i32
    %c0_i32_0 = arith.constant 0 : i32
    %c0_i32_1 = arith.constant 0 : i32
    return %c0_i32, %c0_i32_0 : i32, i32
  }
}

</mosaic_0001>

<llo_original>
// kernel: tpu_custom_call.1
$region0: #{tpu_custom_call.1}
  #allocation0 [shape = 'u32[]', space=smem, size = 0x4, offset = 0x4, fixed_abs, tag = 'smem constant byte address 0x4 - core index']
  #allocation1 [shape = 'u32[72,128]{1,0:T(1,128)}', space=vmem, size = 0x9000, scoped, tag = 'internal scratch']
  #allocation2 [shape = 'f32[16,128]{1,0:T(8,128)}', space=vmem, size = 0x2000, scoped, tag = 'scratch operand']
  #allocation3 [shape = 'f32[16,16]{1,0:T(8,128)}', space=vmem, size = 0x2000, scoped, tag = 'scratch operand']
  %s0 = inlined_call_operand.hbm [shape: bf16[16,1024], index: 0, kind: input, shape index: {}]
  %s1 = inlined_call_operand.hbm [shape: bf16[1024,128], index: 1, kind: input, shape index: {}]
  %s2 = inlined_call_operand.vmem [shape: f32[1,128], index: 2, kind: input, shape index: {}]
  %s3 = inlined_call_operand.hbm [shape: f32[16,128], index: 3, kind: input, shape index: {}]
  %s4 = inlined_call_operand.hbm [shape: f32[1,128], index: 4, kind: output, shape index: {0}]
  %s5 = inlined_call_operand.vmem [shape: s32[16,1], index: 5, kind: output, shape index: {1}]
  %6 = xla_tuple %s4, %s5
  %s7 = sld [smem:[#allocation0]]
  $region54: #{tpu_custom_call.1} parent=0
    _
  %s9 = ssub.s32 1, %s7
  %s10 = scalar_select 0, %s9, %s7
  $region1: #{tpu_custom_call.1} parent=0
    #allocation4 [shape = 'u8[32768]{0}', space=vmem, size = 0x8000, scoped, tag = 'input window, operand 0, single buffered']
    #allocation5 [shape = 's32[1]{0}', space=sflag, size = 0x4, scoped, tag = 'scoped memory for tpu_custom_call.1']
    #allocation6 [shape = 's32[1]{0}', space=sflag, size = 0x4, scoped, tag = 'scoped memory for tpu_custom_call.1']
    #allocation7 [shape = 'u8[262144]{0}', space=vmem, size = 0x40000, scoped, tag = 'input window, operand 1, single buffered']
    #allocation8 [shape = 's32[1]{0}', space=sflag, size = 0x4, scoped, tag = 'scoped memory for tpu_custom_call.1']
    #allocation9 [shape = 'u8[8192]{0}', space=vmem, size = 0x2000, scoped, tag = 'input window, operand 3, single buffered']
    #allocation10 [shape = 'u8[512]{0}', space=vmem, size = 0x400, scoped, tag = 'output window, operand 0, single buffered']
    %11 = vsyncpa [#allocation5], 0
    %12 = vsyncpa [#allocation8], 0
    %13 = vsyncpa [#allocation6], 0
    // Predicated region
    $region2: #{tpu_custom_call.1} parent=1 // pred_check
      _
    $region3: #{tpu_custom_call.1} parent=1 // pred_check_branch
      %15 = sbr.rel (0) target = $region5
    $region4: #{tpu_custom_call.1} parent=1 // pred_region
      %17 = vsyncadd [#allocation5], 0
      %s18 = sshll.u32 %s0, 4
      %s19 = int_to_ptr.hbm [resolvable:$true] %s18
      %s20 = sshll.u32 [#allocation4], 4
      %s21 = int_to_ptr.vmem [resolvable:$true] %s20
      %26 = dma.hbm_to_vmem [thread:$0]  %s19, 1024, %s21, [#allocation5], 512, 512, 32
    $region5: #{tpu_custom_call.1} parent=1 // pred_fallthru
      _
    // Predicated region
    $region6: #{tpu_custom_call.1} parent=1 // pred_check
      _
    $region7: #{tpu_custom_call.1} parent=1 // pred_check_branch
      %28 = sbr.rel (0) target = $region9
    $region8: #{tpu_custom_call.1} parent=1 // pred_region
      %30 = vsyncadd [#allocation8], 0
      %s31 = sshll.u32 %s1, 4
      %s32 = int_to_ptr.hbm [resolvable:$true] %s31
      %s33 = sshll.u32 [#allocation7], 4
      %s34 = int_to_ptr.vmem [resolvable:$true] %s33
      %39 = dma.hbm_to_vmem [thread:$0]  %s32, 8192, %s34, [#allocation8], 64, 64, 4
    $region9: #{tpu_custom_call.1} parent=1 // pred_fallthru
      _
    // Predicated region
    $region10: #{tpu_custom_call.1} parent=1 // pred_check
      _
    $region11: #{tpu_custom_call.1} parent=1 // pred_check_branch
      %41 = sbr.rel (0) target = $region13
    $region12: #{tpu_custom_call.1} parent=1 // pred_region
      _
    $region13: #{tpu_custom_call.1} parent=1 // pred_fallthru
      _
    // Predicated region
    $region14: #{tpu_custom_call.1} parent=1 // pred_check
      _
    $region15: #{tpu_custom_call.1} parent=1 // pred_check_branch
      %43 = sbr.rel (0) target = $region17
    $region16: #{tpu_custom_call.1} parent=1 // pred_region
      %45 = vsyncadd [#allocation8], 0
      %s46 = sshll.u32 %s3, 4
      %s47 = int_to_ptr.hbm [resolvable:$true] %s46
      %s48 = sshll.u32 [#allocation9], 4
      %s49 = int_to_ptr.vmem [resolvable:$true] %s48
      %54 = dma.hbm_to_vmem [thread:$0]  %s47, 256, %s49, [#allocation8], 128, 128, 8
    $region17: #{tpu_custom_call.1} parent=1 // pred_fallthru
      _
    // Predicated region
    $region18: #{tpu_custom_call.1} parent=1 // pred_check
      _
    $region19: #{tpu_custom_call.1} parent=1 // pred_check_branch
      %56 = sbr.rel (0) target = $region21
    $region20: #{tpu_custom_call.1} parent=1 // pred_region
      %58 = dma.done [#allocation5], 1024
    $region21: #{tpu_custom_call.1} parent=1 // pred_fallthru
      _
    // Predicated region
    $region22: #{tpu_custom_call.1} parent=1 // pred_check
      _
    $region23: #{tpu_custom_call.1} parent=1 // pred_check_branch
      %60 = sbr.rel (0) target = $region25
    $region24: #{tpu_custom_call.1} parent=1 // pred_region
      %62 = dma.done [#allocation8], 8192
    $region25: #{tpu_custom_call.1} parent=1 // pred_fallthru
      _
    // Predicated region
    $region26: #{tpu_custom_call.1} parent=1 // pred_check
      _
    $region27: #{tpu_custom_call.1} parent=1 // pred_check_branch
      %64 = sbr.rel (0) target = $region29
    $region28: #{tpu_custom_call.1} parent=1 // pred_region
      %66 = dma.done [#allocation8], 256
    $region29: #{tpu_custom_call.1} parent=1 // pred_fallthru
      _
    %p68 = scmp.eq.s32.totalorder 0, 0
    // Predicated region
    $region30: #{tpu_custom_call.1} parent=1 // pred_check
      %p69 = pneg %p68
    $region31: #{tpu_custom_call.1} parent=1 // pred_check_branch
      %71 = sbr.rel (%p69) target = $region33
    $region32: #{tpu_custom_call.1} parent=1 // pred_region
      %72 = vst [vmem:[#allocation2] sm:$0xff] 0.0
      %73 = vst [vmem:[#allocation2 + $0x8] sm:$0xff] 0.0
      %vm74 = vcmask 130048
      %75 = vst.msk [vmem:[#allocation3] sm:$0xff] %vm74, 0.0
      %76 = vst.msk [vmem:[#allocation3 + $0x8] sm:$0xff] %vm74, 0.0
    $region33: #{tpu_custom_call.1} parent=1 // pred_fallthru
      _
    %v77 = vld [vmem:[#allocation4] sm:$0xff]
    %v78 = vld [vmem:[#allocation4 + $0x8] sm:$0xff]
    %v79 = vld [vmem:[#allocation4 + $0x10] sm:$0xff]
    %v80 = vld [vmem:[#allocation4 + $0x18] sm:$0xff]
    %v81 = vld [vmem:[#allocation4 + $0x20] sm:$0xff]
    %v82 = vld [vmem:[#allocation4 + $0x28] sm:$0xff]
    %v83 = vld [vmem:[#allocation4 + $0x30] sm:$0xff]
    %v84 = vld [vmem:[#allocation4 + $0x38] sm:$0xff]
    %v85 = vld [vmem:[#allocation7] sm:$0xf]
    %v86 = vld [vmem:[#allocation7 + $0x4] sm:$0xf]
    %v87 = vld [vmem:[#allocation7 + $0x8] sm:$0xf]
    %v88 = vld [vmem:[#allocation7 + $0xc] sm:$0xf]
    %v89 = vld [vmem:[#allocation7 + $0x10] sm:$0xf]
    %v90 = vld [vmem:[#allocation7 + $0x14] sm:$0xf]
    %v91 = vld [vmem:[#allocation7 + $0x18] sm:$0xf]
    %v92 = vld [vmem:[#allocation7 + $0x1c] sm:$0xf]
    %v93 = vld [vmem:[#allocation7 + $0x20] sm:$0xf]
    %v94 = vld [vmem:[#allocation7 + $0x24] sm:$0xf]
    %v95 = vld [vmem:[#allocation7 + $0x28] sm:$0xf]
    %v96 = vld [vmem:[#allocation7 + $0x2c] sm:$0xf]
    %v97 = vld [vmem:[#allocation7 + $0x30] sm:$0xf]
    %v98 = vld [vmem:[#allocation7 + $0x34] sm:$0xf]
    %v99 = vld [vmem:[#allocation7 + $0x38] sm:$0xf]
    %v100 = vld [vmem:[#allocation7 + $0x3c] sm:$0xf]
    %v101 = vld [vmem:[#allocation7 + $0x40] sm:$0xf]
    %v102 = vld [vmem:[#allocation7 + $0x44] sm:$0xf]
    %v103 = vld [vmem:[#allocation7 + $0x48] sm:$0xf]
    %v104 = vld [vmem:[#allocation7 + $0x4c] sm:$0xf]
    %v105 = vld [vmem:[#allocation7 + $0x50] sm:$0xf]
    %v106 = vld [vmem:[#allocation7 + $0x54] sm:$0xf]
    %v107 = vld [vmem:[#allocation7 + $0x58] sm:$0xf]
    %v108 = vld [vmem:[#allocation7 + $0x5c] sm:$0xf]
    %v109 = vld [vmem:[#allocation7 + $0x60] sm:$0xf]
    %v110 = vld [vmem:[#allocation7 + $0x64] sm:$0xf]
    %v111 = vld [vmem:[#allocation7 + $0x68] sm:$0xf]
    %v112 = vld [vmem:[#allocation7 + $0x6c] sm:$0xf]
    %v113 = vld [vmem:[#allocation7 + $0x70] sm:$0xf]
    %v114 = vld [vmem:[#allocation7 + $0x74] sm:$0xf]
    %v115 = vld [vmem:[#allocation7 + $0x78] sm:$0xf]
    %v116 = vld [vmem:[#allocation7 + $0x7c] sm:$0xf]
    %v117 = vld [vmem:[#allocation7 + $0x80] sm:$0xf]
    %v118 = vld [vmem:[#allocation7 + $0x84] sm:$0xf]
    %v119 = vld [vmem:[#allocation7 + $0x88] sm:$0xf]
    %v120 = vld [vmem:[#allocation7 + $0x8c] sm:$0xf]
    %v121 = vld [vmem:[#allocation7 + $0x90] sm:$0xf]
    %v122 = vld [vmem:[#allocation7 + $0x94] sm:$0xf]
    %v123 = vld [vmem:[#allocation7 + $0x98] sm:$0xf]
    %v124 = vld [vmem:[#allocation7 + $0x9c] sm:$0xf]
    %v125 = vld [vmem:[#allocation7 + $0xa0] sm:$0xf]
    %v126 = vld [vmem:[#allocation7 + $0xa4] sm:$0xf]
    %v127 = vld [vmem:[#allocation7 + $0xa8] sm:$0xf]
    %v128 = vld [vmem:[#allocation7 + $0xac] sm:$0xf]
    %v129 = vld [vmem:[#allocation7 + $0xb0] sm:$0xf]
    %v130 = vld [vmem:[#allocation7 + $0xb4] sm:$0xf]
    %v131 = vld [vmem:[#allocation7 + $0xb8] sm:$0xf]
    %v132 = vld [vmem:[#allocation7 + $0xbc] sm:$0xf]
    %v133 = vld [vmem:[#allocation7 + $0xc0] sm:$0xf]
    %v134 = vld [vmem:[#allocation7 + $0xc4] sm:$0xf]
    %v135 = vld [vmem:[#allocation7 + $0xc8] sm:$0xf]
    %v136 = vld [vmem:[#allocation7 + $0xcc] sm:$0xf]
    %v137 = vld [vmem:[#allocation7 + $0xd0] sm:$0xf]
    %v138 = vld [vmem:[#allocation7 + $0xd4] sm:$0xf]
    %v139 = vld [vmem:[#allocation7 + $0xd8] sm:$0xf]
    %v140 = vld [vmem:[#allocation7 + $0xdc] sm:$0xf]
    %v141 = vld [vmem:[#allocation7 + $0xe0] sm:$0xf]
    %v142 = vld [vmem:[#allocation7 + $0xe4] sm:$0xf]
    %v143 = vld [vmem:[#allocation7 + $0xe8] sm:$0xf]
    %v144 = vld [vmem:[#allocation7 + $0xec] sm:$0xf]
    %v145 = vld [vmem:[#allocation7 + $0xf0] sm:$0xf]
    %v146 = vld [vmem:[#allocation7 + $0xf4] sm:$0xf]
    %v147 = vld [vmem:[#allocation7 + $0xf8] sm:$0xf]
    %v148 = vld [vmem:[#allocation7 + $0xfc] sm:$0xf]
    %v149 = vld [vmem:[#allocation7 + $0x100] sm:$0xf]
    %v150 = vld [vmem:[#allocation7 + $0x104] sm:$0xf]
    %v151 = vld [vmem:[#allocation7 + $0x108] sm:$0xf]
    %v152 = vld [vmem:[#allocation7 + $0x10c] sm:$0xf]
    %v153 = vld [vmem:[#allocation7 + $0x110] sm:$0xf]
    %v154 = vld [vmem:[#allocation7 + $0x114] sm:$0xf]
    %v155 = vld [vmem:[#allocation7 + $0x118] sm:$0xf]
    %v156 = vld [vmem:[#allocation7 + $0x11c] sm:$0xf]
    %v157 = vld [vmem:[#allocation7 + $0x120] sm:$0xf]
    %v158 = vld [vmem:[#allocation7 + $0x124] sm:$0xf]
    %v159 = vld [vmem:[#allocation7 + $0x128] sm:$0xf]
    %v160 = vld [vmem:[#allocation7 + $0x12c] sm:$0xf]
    %v161 = vld [vmem:[#allocation7 + $0x130] sm:$0xf]
    %v162 = vld [vmem:[#allocation7 + $0x134] sm:$0xf]
    %v163 = vld [vmem:[#allocation7 + $0x138] sm:$0xf]
    %v164 = vld [vmem:[#allocation7 + $0x13c] sm:$0xf]
    %v165 = vld [vmem:[#allocation7 + $0x140] sm:$0xf]
    %v166 = vld [vmem:[#allocation7 + $0x144] sm:$0xf]
    %v167 = vld [vmem:[#allocation7 + $0x148] sm:$0xf]
    %v168 = vld [vmem:[#allocation7 + $0x14c] sm:$0xf]
    %v169 = vld [vmem:[#allocation7 + $0x150] sm:$0xf]
    %v170 = vld [vmem:[#allocation7 + $0x154] sm:$0xf]
    %v171 = vld [vmem:[#allocation7 + $0x158] sm:$0xf]
    %v172 = vld [vmem:[#allocation7 + $0x15c] sm:$0xf]
    %v173 = vld [vmem:[#allocation7 + $0x160] sm:$0xf]
    %v174 = vld [vmem:[#allocation7 + $0x164] sm:$0xf]
    %v175 = vld [vmem:[#allocation7 + $0x168] sm:$0xf]
    %v176 = vld [vmem:[#allocation7 + $0x16c] sm:$0xf]
    %v177 = vld [vmem:[#allocation7 + $0x170] sm:$0xf]
    %v178 = vld [vmem:[#allocation7 + $0x174] sm:$0xf]
    %v179 = vld [vmem:[#allocation7 + $0x178] sm:$0xf]
    %v180 = vld [vmem:[#allocation7 + $0x17c] sm:$0xf]
    %v181 = vld [vmem:[#allocation7 + $0x180] sm:$0xf]
    %v182 = vld [vmem:[#allocation7 + $0x184] sm:$0xf]
    %v183 = vld [vmem:[#allocation7 + $0x188] sm:$0xf]
    %v184 = vld [vmem:[#allocation7 + $0x18c] sm:$0xf]
    %v185 = vld [vmem:[#allocation7 + $0x190] sm:$0xf]
    %v186 = vld [vmem:[#allocation7 + $0x194] sm:$0xf]
    %v187 = vld [vmem:[#allocation7 + $0x198] sm:$0xf]
    %v188 = vld [vmem:[#allocation7 + $0x19c] sm:$0xf]
    %v189 = vld [vmem:[#allocation7 + $0x1a0] sm:$0xf]
    %v190 = vld [vmem:[#allocation7 + $0x1a4] sm:$0xf]
    %v191 = vld [vmem:[#allocation7 + $0x1a8] sm:$0xf]
    %v192 = vld [vmem:[#allocation7 + $0x1ac] sm:$0xf]
    %v193 = vld [vmem:[#allocation7 + $0x1b0] sm:$0xf]
    %v194 = vld [vmem:[#allocation7 + $0x1b4] sm:$0xf]
    %v195 = vld [vmem:[#allocation7 + $0x1b8] sm:$0xf]
    %v196 = vld [vmem:[#allocation7 + $0x1bc] sm:$0xf]
    %v197 = vld [vmem:[#allocation7 + $0x1c0] sm:$0xf]
    %v198 = vld [vmem:[#allocation7 + $0x1c4] sm:$0xf]
    %v199 = vld [vmem:[#allocation7 + $0x1c8] sm:$0xf]
    %v200 = vld [vmem:[#allocation7 + $0x1cc] sm:$0xf]
    %v201 = vld [vmem:[#allocation7 + $0x1d0] sm:$0xf]
    %v202 = vld [vmem:[#allocation7 + $0x1d4] sm:$0xf]
    %v203 = vld [vmem:[#allocation7 + $0x1d8] sm:$0xf]
    %v204 = vld [vmem:[#allocation7 + $0x1dc] sm:$0xf]
    %v205 = vld [vmem:[#allocation7 + $0x1e0] sm:$0xf]
    %v206 = vld [vmem:[#allocation7 + $0x1e4] sm:$0xf]
    %v207 = vld [vmem:[#allocation7 + $0x1e8] sm:$0xf]
    %v208 = vld [vmem:[#allocation7 + $0x1ec] sm:$0xf]
    %v209 = vld [vmem:[#allocation7 + $0x1f0] sm:$0xf]
    %v210 = vld [vmem:[#allocation7 + $0x1f4] sm:$0xf]
    %v211 = vld [vmem:[#allocation7 + $0x1f8] sm:$0xf]
    %v212 = vld [vmem:[#allocation7 + $0x1fc] sm:$0xf]
    %v213 = vld [vmem:[#allocation2] sm:$0xff]
    %v214 = vld [vmem:[#allocation2 + $0x8] sm:$0xff]
    %v223 = vunpack.c.l.b16 %v77
    %v224 = vunpack.c.h.b16 %v77
    %v225 = vunpack.c.l.b16 %v78
    %v226 = vunpack.c.h.b16 %v78
    %v227 = vunpack.c.l.b16 %v79
    %v228 = vunpack.c.h.b16 %v79
    %v229 = vunpack.c.l.b16 %v80
    %v230 = vunpack.c.h.b16 %v80
    %v231 = vunpack.c.l.b16 %v81
    %v232 = vunpack.c.h.b16 %v81
    %v233 = vunpack.c.l.b16 %v82
    %v234 = vunpack.c.h.b16 %v82
    %v235 = vunpack.c.l.b16 %v83
    %v236 = vunpack.c.h.b16 %v83
    %v237 = vunpack.c.l.b16 %v84
    %v238 = vunpack.c.h.b16 %v84
    %v239 = vpack.c.b16 %v231, %v223
    %v240 = vpack.c.b16 %v232, %v224
    %v241 = vpack.c.b16 %v233, %v225
    %v242 = vpack.c.b16 %v234, %v226
    %v243 = vpack.c.b16 %v235, %v227
    %v244 = vpack.c.b16 %v236, %v228
    %v245 = vpack.c.b16 %v237, %v229
    %v246 = vpack.c.b16 %v238, %v230
    %v383 = vunpack.c.l.b16 %v85
    %v384 = vunpack.c.l.b16 %v86
    %v385 = vunpack.c.l.b16 %v87
    %v386 = vunpack.c.l.b16 %v88
    %v387 = vunpack.c.l.b16 %v89
    %v388 = vunpack.c.l.b16 %v90
    %v389 = vunpack.c.l.b16 %v91
    %v390 = vunpack.c.l.b16 %v92
    %v391 = vunpack.c.l.b16 %v93
    %v392 = vunpack.c.l.b16 %v94
    %v393 = vunpack.c.l.b16 %v95
    %v394 = vunpack.c.l.b16 %v96
    %v395 = vunpack.c.l.b16 %v97
    %v396 = vunpack.c.l.b16 %v98
    %v397 = vunpack.c.l.b16 %v99
    %v398 = vunpack.c.l.b16 %v100
    %v399 = vunpack.c.l.b16 %v101
    %v400 = vunpack.c.l.b16 %v102
    %v401 = vunpack.c.l.b16 %v103
    %v402 = vunpack.c.l.b16 %v104
    %v403 = vunpack.c.l.b16 %v105
    %v404 = vunpack.c.l.b16 %v106
    %v405 = vunpack.c.l.b16 %v107
    %v406 = vunpack.c.l.b16 %v108
    %v407 = vunpack.c.l.b16 %v109
    %v408 = vunpack.c.l.b16 %v110
    %v409 = vunpack.c.l.b16 %v111
    %v410 = vunpack.c.l.b16 %v112
    %v411 = vunpack.c.l.b16 %v113
    %v412 = vunpack.c.l.b16 %v114
    %v413 = vunpack.c.l.b16 %v115
    %v414 = vunpack.c.l.b16 %v116
    %v415 = vunpack.c.l.b16 %v117
    %v416 = vunpack.c.l.b16 %v118
    %v417 = vunpack.c.l.b16 %v119
    %v418 = vunpack.c.l.b16 %v120
    %v419 = vunpack.c.l.b16 %v121
    %v420 = vunpack.c.l.b16 %v122
    %v421 = vunpack.c.l.b16 %v123
    %v422 = vunpack.c.l.b16 %v124
    %v423 = vunpack.c.l.b16 %v125
    %v424 = vunpack.c.l.b16 %v126
    %v425 = vunpack.c.l.b16 %v127
    %v426 = vunpack.c.l.b16 %v128
    %v427 = vunpack.c.l.b16 %v129
    %v428 = vunpack.c.l.b16 %v130
    %v429 = vunpack.c.l.b16 %v131
    %v430 = vunpack.c.l.b16 %v132
    %v431 = vunpack.c.l.b16 %v133
    %v432 = vunpack.c.l.b16 %v134
    %v433 = vunpack.c.l.b16 %v135
    %v434 = vunpack.c.l.b16 %v136
    %v435 = vunpack.c.l.b16 %v137
    %v436 = vunpack.c.l.b16 %v138
    %v437 = vunpack.c.l.b16 %v139
    %v438 = vunpack.c.l.b16 %v140
    %v439 = vunpack.c.l.b16 %v141
    %v440 = vunpack.c.l.b16 %v142
    %v441 = vunpack.c.l.b16 %v143
    %v442 = vunpack.c.l.b16 %v144
    %v443 = vunpack.c.l.b16 %v145
    %v444 = vunpack.c.l.b16 %v146
    %v445 = vunpack.c.l.b16 %v147
    %v446 = vunpack.c.l.b16 %v148
    %v447 = vunpack.c.l.b16 %v149
    %v448 = vunpack.c.l.b16 %v150
    %v449 = vunpack.c.l.b16 %v151
    %v450 = vunpack.c.l.b16 %v152
    %v451 = vunpack.c.l.b16 %v153
    %v452 = vunpack.c.l.b16 %v154
    %v453 = vunpack.c.l.b16 %v155
    %v454 = vunpack.c.l.b16 %v156
    %v455 = vunpack.c.l.b16 %v157
    %v456 = vunpack.c.l.b16 %v158
    %v457 = vunpack.c.l.b16 %v159
    %v458 = vunpack.c.l.b16 %v160
    %v459 = vunpack.c.l.b16 %v161
    %v460 = vunpack.c.l.b16 %v162
    %v461 = vunpack.c.l.b16 %v163
    %v462 = vunpack.c.l.b16 %v164
    %v463 = vunpack.c.l.b16 %v165
    %v464 = vunpack.c.l.b16 %v166
    %v465 = vunpack.c.l.b16 %v167
    %v466 = vunpack.c.l.b16 %v168
    %v467 = vunpack.c.l.b16 %v169
    %v468 = vunpack.c.l.b16 %v170
    %v469 = vunpack.c.l.b16 %v171
    %v470 = vunpack.c.l.b16 %v172
    %v471 = vunpack.c.l.b16 %v173
    %v472 = vunpack.c.l.b16 %v174
    %v473 = vunpack.c.l.b16 %v175
    %v474 = vunpack.c.l.b16 %v176
    %v475 = vunpack.c.l.b16 %v177
    %v476 = vunpack.c.l.b16 %v178
    %v477 = vunpack.c.l.b16 %v179
    %v478 = vunpack.c.l.b16 %v180
    %v479 = vunpack.c.l.b16 %v181
    %v480 = vunpack.c.l.b16 %v182
    %v481 = vunpack.c.l.b16 %v183
    %v482 = vunpack.c.l.b16 %v184
    %v483 = vunpack.c.l.b16 %v185
    %v484 = vunpack.c.l.b16 %v186
    %v485 = vunpack.c.l.b16 %v187
    %v486 = vunpack.c.l.b16 %v188
    %v487 = vunpack.c.l.b16 %v189
    %v488 = vunpack.c.l.b16 %v190
    %v489 = vunpack.c.l.b16 %v191
    %v490 = vunpack.c.l.b16 %v192
    %v491 = vunpack.c.l.b16 %v193
    %v492 = vunpack.c.l.b16 %v194
    %v493 = vunpack.c.l.b16 %v195
    %v494 = vunpack.c.l.b16 %v196
    %v495 = vunpack.c.l.b16 %v197
    %v496 = vunpack.c.l.b16 %v198
    %v497 = vunpack.c.l.b16 %v199
    %v498 = vunpack.c.l.b16 %v200
    %v499 = vunpack.c.l.b16 %v201
    %v500 = vunpack.c.l.b16 %v202
    %v501 = vunpack.c.l.b16 %v203
    %v502 = vunpack.c.l.b16 %v204
    %v503 = vunpack.c.l.b16 %v205
    %v504 = vunpack.c.l.b16 %v206
    %v505 = vunpack.c.l.b16 %v207
    %v506 = vunpack.c.l.b16 %v208
    %v507 = vunpack.c.l.b16 %v209
    %v508 = vunpack.c.l.b16 %v210
    %v509 = vunpack.c.l.b16 %v211
    %v510 = vunpack.c.l.b16 %v212
    %v511 = vpack.c.b16 %v384, %v383
    %v512 = vpack.c.b16 %v386, %v385
    %v513 = vpack.c.b16 %v388, %v387
    %v514 = vpack.c.b16 %v390, %v389
    %v515 = vpack.c.b16 %v392, %v391
    %v516 = vpack.c.b16 %v394, %v393
    %v517 = vpack.c.b16 %v396, %v395
    %v518 = vpack.c.b16 %v398, %v397
    %v519 = vpack.c.b16 %v400, %v399
    %v520 = vpack.c.b16 %v402, %v401
    %v521 = vpack.c.b16 %v404, %v403
    %v522 = vpack.c.b16 %v406, %v405
    %v523 = vpack.c.b16 %v408, %v407
    %v524 = vpack.c.b16 %v410, %v409
    %v525 = vpack.c.b16 %v412, %v411
    %v526 = vpack.c.b16 %v414, %v413
    %v527 = vpack.c.b16 %v416, %v415
    %v528 = vpack.c.b16 %v418, %v417
    %v529 = vpack.c.b16 %v420, %v419
    %v530 = vpack.c.b16 %v422, %v421
    %v531 = vpack.c.b16 %v424, %v423
    %v532 = vpack.c.b16 %v426, %v425
    %v533 = vpack.c.b16 %v428, %v427
    %v534 = vpack.c.b16 %v430, %v429
    %v535 = vpack.c.b16 %v432, %v431
    %v536 = vpack.c.b16 %v434, %v433
    %v537 = vpack.c.b16 %v436, %v435
    %v538 = vpack.c.b16 %v438, %v437
    %v539 = vpack.c.b16 %v440, %v439
    %v540 = vpack.c.b16 %v442, %v441
    %v541 = vpack.c.b16 %v444, %v443
    %v542 = vpack.c.b16 %v446, %v445
    %v543 = vpack.c.b16 %v448, %v447
    %v544 = vpack.c.b16 %v450, %v449
    %v545 = vpack.c.b16 %v452, %v451
    %v546 = vpack.c.b16 %v454, %v453
    %v547 = vpack.c.b16 %v456, %v455
    %v548 = vpack.c.b16 %v458, %v457
    %v549 = vpack.c.b16 %v460, %v459
    %v550 = vpack.c.b16 %v462, %v461
    %v551 = vpack.c.b16 %v464, %v463
    %v552 = vpack.c.b16 %v466, %v465
    %v553 = vpack.c.b16 %v468, %v467
    %v554 = vpack.c.b16 %v470, %v469
    %v555 = vpack.c.b16 %v472, %v471
    %v556 = vpack.c.b16 %v474, %v473
    %v557 = vpack.c.b16 %v476, %v475
    %v558 = vpack.c.b16 %v478, %v477
    %v559 = vpack.c.b16 %v480, %v479
    %v560 = vpack.c.b16 %v482, %v481
    %v561 = vpack.c.b16 %v484, %v483
    %v562 = vpack.c.b16 %v486, %v485
    %v563 = vpack.c.b16 %v488, %v487
    %v564 = vpack.c.b16 %v490, %v489
    %v565 = vpack.c.b16 %v492, %v491
    %v566 = vpack.c.b16 %v494, %v493
    %v567 = vpack.c.b16 %v496, %v495
    %v568 = vpack.c.b16 %v498, %v497
    %v569 = vpack.c.b16 %v500, %v499
    %v570 = vpack.c.b16 %v502, %v501
    %v571 = vpack.c.b16 %v504, %v503
    %v572 = vpack.c.b16 %v506, %v505
    %v573 = vpack.c.b16 %v508, %v507
    %v574 = vpack.c.b16 %v510, %v509
    %639 = vmatpush.bf16.msra.mxu0 %v518
    %640 = vmatpush.bf16.msra.mxu0 %v517
    %641 = vmatpush.bf16.msra.mxu0 %v516
    %642 = vmatpush.bf16.msra.mxu0 %v515
    %643 = vmatpush.bf16.msra.mxu0 %v514
    %644 = vmatpush.bf16.msra.mxu0 %v513
    %645 = vmatpush.bf16.msra.mxu0 %v512
    %646 = vmatpush.bf16.msra.mxu0 %v511
    %647 = vmatmul.bf16.gmra.mxu0 %v239
    %v648 = vpop.f32.mrf.mxu0
    %v649 = vadd.f32 0.0, %v648
    %v650 = vpop.f32.mrf.mxu0
    %v651 = vadd.f32 0.0, %v650
    %652 = vdwg.mxu0
    %653 = vmatpush.bf16.msra.mxu0 %v526
    %654 = vmatpush.bf16.msra.mxu0 %v525
    %655 = vmatpush.bf16.msra.mxu0 %v524
    %656 = vmatpush.bf16.msra.mxu0 %v523
    %657 = vmatpush.bf16.msra.mxu0 %v522
    %658 = vmatpush.bf16.msra.mxu0 %v521
    %659 = vmatpush.bf16.msra.mxu0 %v520
    %660 = vmatpush.bf16.msra.mxu0 %v519
    %661 = vmatmul.bf16.gmra.mxu0 %v240
    %v662 = vpop.f32.mrf.mxu0
    %v663 = vadd.f32 %v649, %v662
    %v664 = vpop.f32.mrf.mxu0
    %v665 = vadd.f32 %v651, %v664
    %666 = vdwg.mxu0
    %667 = vmatpush.bf16.msra.mxu0 %v534
    %668 = vmatpush.bf16.msra.mxu0 %v533
    %669 = vmatpush.bf16.msra.mxu0 %v532
    %670 = vmatpush.bf16.msra.mxu0 %v531
    %671 = vmatpush.bf16.msra.mxu0 %v530
    %672 = vmatpush.bf16.msra.mxu0 %v529
    %673 = vmatpush.bf16.msra.mxu0 %v528
    %674 = vmatpush.bf16.msra.mxu0 %v527
    %675 = vmatmul.bf16.gmra.mxu0 %v241
    %v676 = vpop.f32.mrf.mxu0
    %v677 = vadd.f32 %v663, %v676
    %v678 = vpop.f32.mrf.mxu0
    %v679 = vadd.f32 %v665, %v678
    %680 = vdwg.mxu0
    %681 = vmatpush.bf16.msra.mxu0 %v542
    %682 = vmatpush.bf16.msra.mxu0 %v541
    %683 = vmatpush.bf16.msra.mxu0 %v540
    %684 = vmatpush.bf16.msra.mxu0 %v539
    %685 = vmatpush.bf16.msra.mxu0 %v538
    %686 = vmatpush.bf16.msra.mxu0 %v537
    %687 = vmatpush.bf16.msra.mxu0 %v536
    %688 = vmatpush.bf16.msra.mxu0 %v535
    %689 = vmatmul.bf16.gmra.mxu0 %v242
    %v690 = vpop.f32.mrf.mxu0
    %v691 = vadd.f32 %v677, %v690
    %v692 = vpop.f32.mrf.mxu0
    %v693 = vadd.f32 %v679, %v692
    %694 = vdwg.mxu0
    %695 = vmatpush.bf16.msra.mxu0 %v550
    %696 = vmatpush.bf16.msra.mxu0 %v549
    %697 = vmatpush.bf16.msra.mxu0 %v548
    %698 = vmatpush.bf16.msra.mxu0 %v547
    %699 = vmatpush.bf16.msra.mxu0 %v546
    %700 = vmatpush.bf16.msra.mxu0 %v545
    %701 = vmatpush.bf16.msra.mxu0 %v544
    %702 = vmatpush.bf16.msra.mxu0 %v543
    %703 = vmatmul.bf16.gmra.mxu0 %v243
    %v704 = vpop.f32.mrf.mxu0
    %v705 = vadd.f32 %v691, %v704
    %v706 = vpop.f32.mrf.mxu0
    %v707 = vadd.f32 %v693, %v706
    %708 = vdwg.mxu0
    %709 = vmatpush.bf16.msra.mxu0 %v558
    %710 = vmatpush.bf16.msra.mxu0 %v557
    %711 = vmatpush.bf16.msra.mxu0 %v556
    %712 = vmatpush.bf16.msra.mxu0 %v555
    %713 = vmatpush.bf16.msra.mxu0 %v554
    %714 = vmatpush.bf16.msra.mxu0 %v553
    %715 = vmatpush.bf16.msra.mxu0 %v552
    %716 = vmatpush.bf16.msra.mxu0 %v551
    %717 = vmatmul.bf16.gmra.mxu0 %v244
    %v718 = vpop.f32.mrf.mxu0
    %v719 = vadd.f32 %v705, %v718
    %v720 = vpop.f32.mrf.mxu0
    %v721 = vadd.f32 %v707, %v720
    %722 = vdwg.mxu0
    %723 = vmatpush.bf16.msra.mxu0 %v566
    %724 = vmatpush.bf16.msra.mxu0 %v565
    %725 = vmatpush.bf16.msra.mxu0 %v564
    %726 = vmatpush.bf16.msra.mxu0 %v563
    %727 = vmatpush.bf16.msra.mxu0 %v562
    %728 = vmatpush.bf16.msra.mxu0 %v561
    %729 = vmatpush.bf16.msra.mxu0 %v560
    %730 = vmatpush.bf16.msra.mxu0 %v559
    %731 = vmatmul.bf16.gmra.mxu0 %v245
    %v732 = vpop.f32.mrf.mxu0
    %v733 = vadd.f32 %v719, %v732
    %v734 = vpop.f32.mrf.mxu0
    %v735 = vadd.f32 %v721, %v734
    %736 = vdwg.mxu0
    %737 = vmatpush.bf16.msra.mxu0 %v574
    %738 = vmatpush.bf16.msra.mxu0 %v573
    %739 = vmatpush.bf16.msra.mxu0 %v572
    %740 = vmatpush.bf16.msra.mxu0 %v571
    %741 = vmatpush.bf16.msra.mxu0 %v570
    %742 = vmatpush.bf16.msra.mxu0 %v569
    %743 = vmatpush.bf16.msra.mxu0 %v568
    %744 = vmatpush.bf16.msra.mxu0 %v567
    %745 = vmatmul.bf16.gmra.mxu0 %v246
    %v746 = vpop.f32.mrf.mxu0
    %v747 = vadd.f32 %v733, %v746
    %v748 = vpop.f32.mrf.mxu0
    %v749 = vadd.f32 %v735, %v748
    %750 = vdwg.mxu0
    %v751 = vadd.f32 %v213, %v747
    %v752 = vadd.f32 %v214, %v749
    %753 = vst [vmem:[#allocation2] sm:$0xff] %v751
    %754 = vst [vmem:[#allocation2 + $0x8] sm:$0xff] %v752
    %v755 = vld [vmem:[#allocation3] sm:$0xff]
    %v756 = vld [vmem:[#allocation3 + $0x8] sm:$0xff]
    %757 = vmatpush.bf16.xpose.msra.mxu0 0
    %758 = vmatpush.bf16.xpose.msra.mxu0 0
    %759 = vmatpush.bf16.xpose.msra.mxu0 0
    %760 = vmatpush.bf16.xpose.msra.mxu0 0
    %761 = vmatpush.bf16.xpose.msra.mxu0 0
    %762 = vmatpush.bf16.xpose.msra.mxu0 0
    %763 = vmatpush.bf16.xpose.msra.mxu0 0
    %764 = vmatpush.bf16.xpose.msra.mxu0 %v239
    %765 = vmatmul.bf16.gmra.mxu0 %v239
    %v766 = vpop.f32.mrf.mxu0
    %v767 = vadd.f32 0.0, %v766
    %v768 = vpop.f32.mrf.mxu0
    %v769 = vadd.f32 0.0, %v768
    %770 = vdwg.mxu0
    %771 = vmatpush.bf16.xpose.msra.mxu0 0
    %772 = vmatpush.bf16.xpose.msra.mxu0 0
    %773 = vmatpush.bf16.xpose.msra.mxu0 0
    %774 = vmatpush.bf16.xpose.msra.mxu0 0
    %775 = vmatpush.bf16.xpose.msra.mxu0 0
    %776 = vmatpush.bf16.xpose.msra.mxu0 0
    %777 = vmatpush.bf16.xpose.msra.mxu0 0
    %778 = vmatpush.bf16.xpose.msra.mxu0 %v240
    %779 = vmatmul.bf16.gmra.mxu0 %v240
    %v780 = vpop.f32.mrf.mxu0
    %v781 = vadd.f32 %v767, %v780
    %v782 = vpop.f32.mrf.mxu0
    %v783 = vadd.f32 %v769, %v782
    %784 = vdwg.mxu0
    %785 = vmatpush.bf16.xpose.msra.mxu0 0
    %786 = vmatpush.bf16.xpose.msra.mxu0 0
    %787 = vmatpush.bf16.xpose.msra.mxu0 0
    %788 = vmatpush.bf16.xpose.msra.mxu0 0
    %789 = vmatpush.bf16.xpose.msra.mxu0 0
    %790 = vmatpush.bf16.xpose.msra.mxu0 0
    %791 = vmatpush.bf16.xpose.msra.mxu0 0
    %792 = vmatpush.bf16.xpose.msra.mxu0 %v241
    %793 = vmatmul.bf16.gmra.mxu0 %v241
    %v794 = vpop.f32.mrf.mxu0
    %v795 = vadd.f32 %v781, %v794
    %v796 = vpop.f32.mrf.mxu0
    %v797 = vadd.f32 %v783, %v796
    %798 = vdwg.mxu0
    %799 = vmatpush.bf16.xpose.msra.mxu0 0
    %800 = vmatpush.bf16.xpose.msra.mxu0 0
    %801 = vmatpush.bf16.xpose.msra.mxu0 0
    %802 = vmatpush.bf16.xpose.msra.mxu0 0
    %803 = vmatpush.bf16.xpose.msra.mxu0 0
    %804 = vmatpush.bf16.xpose.msra.mxu0 0
    %805 = vmatpush.bf16.xpose.msra.mxu0 0
    %806 = vmatpush.bf16.xpose.msra.mxu0 %v242
    %807 = vmatmul.bf16.gmra.mxu0 %v242
    %v808 = vpop.f32.mrf.mxu0
    %v809 = vadd.f32 %v795, %v808
    %v810 = vpop.f32.mrf.mxu0
    %v811 = vadd.f32 %v797, %v810
    %812 = vdwg.mxu0
    %813 = vmatpush.bf16.xpose.msra.mxu0 0
    %814 = vmatpush.bf16.xpose.msra.mxu0 0
    %815 = vmatpush.bf16.xpose.msra.mxu0 0
    %816 = vmatpush.bf16.xpose.msra.mxu0 0
    %817 = vmatpush.bf16.xpose.msra.mxu0 0
    %818 = vmatpush.bf16.xpose.msra.mxu0 0
    %819 = vmatpush.bf16.xpose.msra.mxu0 0
    %820 = vmatpush.bf16.xpose.msra.mxu0 %v243
    %821 = vmatmul.bf16.gmra.mxu0 %v243
    %v822 = vpop.f32.mrf.mxu0
    %v823 = vadd.f32 %v809, %v822
    %v824 = vpop.f32.mrf.mxu0
    %v825 = vadd.f32 %v811, %v824
    %826 = vdwg.mxu0
    %827 = vmatpush.bf16.xpose.msra.mxu0 0
    %828 = vmatpush.bf16.xpose.msra.mxu0 0
    %829 = vmatpush.bf16.xpose.msra.mxu0 0
    %830 = vmatpush.bf16.xpose.msra.mxu0 0
    %831 = vmatpush.bf16.xpose.msra.mxu0 0
    %832 = vmatpush.bf16.xpose.msra.mxu0 0
    %833 = vmatpush.bf16.xpose.msra.mxu0 0
    %834 = vmatpush.bf16.xpose.msra.mxu0 %v244
    %835 = vmatmul.bf16.gmra.mxu0 %v244
    %v836 = vpop.f32.mrf.mxu0
    %v837 = vadd.f32 %v823, %v836
    %v838 = vpop.f32.mrf.mxu0
    %v839 = vadd.f32 %v825, %v838
    %840 = vdwg.mxu0
    %841 = vmatpush.bf16.xpose.msra.mxu0 0
    %842 = vmatpush.bf16.xpose.msra.mxu0 0
    %843 = vmatpush.bf16.xpose.msra.mxu0 0
    %844 = vmatpush.bf16.xpose.msra.mxu0 0
    %845 = vmatpush.bf16.xpose.msra.mxu0 0
    %846 = vmatpush.bf16.xpose.msra.mxu0 0
    %847 = vmatpush.bf16.xpose.msra.mxu0 0
    %848 = vmatpush.bf16.xpose.msra.mxu0 %v245
    %849 = vmatmul.bf16.gmra.mxu0 %v245
    %v850 = vpop.f32.mrf.mxu0
    %v851 = vadd.f32 %v837, %v850
    %v852 = vpop.f32.mrf.mxu0
    %v853 = vadd.f32 %v839, %v852
    %854 = vdwg.mxu0
    %855 = vmatpush.bf16.xpose.msra.mxu0 0
    %856 = vmatpush.bf16.xpose.msra.mxu0 0
    %857 = vmatpush.bf16.xpose.msra.mxu0 0
    %858 = vmatpush.bf16.xpose.msra.mxu0 0
    %859 = vmatpush.bf16.xpose.msra.mxu0 0
    %860 = vmatpush.bf16.xpose.msra.mxu0 0
    %861 = vmatpush.bf16.xpose.msra.mxu0 0
    %862 = vmatpush.bf16.xpose.msra.mxu0 %v246
    %863 = vmatmul.bf16.gmra.mxu0 %v246
    %v864 = vpop.f32.mrf.mxu0
    %v865 = vadd.f32 %v851, %v864
    %v866 = vpop.f32.mrf.mxu0
    %v867 = vadd.f32 %v853, %v866
    %868 = vdwg.mxu0
    %v869 = vadd.f32 %v755, %v865
    %v870 = vadd.f32 %v756, %v867
    %vm871 = vcmask 130048
    %872 = vst.msk [vmem:[#allocation3] sm:$0xff] %vm871, %v869
    %873 = vst.msk [vmem:[#allocation3 + $0x8] sm:$0xff] %vm871, %v870
    // Predicated region
    $region34: #{tpu_custom_call.1} parent=1 // pred_check
      %p874 = pneg %p68
    $region35: #{tpu_custom_call.1} parent=1 // pred_check_branch
      %876 = sbr.rel (%p874) target = $region37
    $region36: #{tpu_custom_call.1} parent=1 // pred_region
      %v877 = vld [vmem:[#allocation2] sm:$0xff]
      %v878 = vld [vmem:[#allocation2 + $0x8] sm:$0xff]
      %v879 = vld [vmem:[%s2] sm:$0x1]
      %v881 = vperm.slane %v879, 0
      %v883 = vadd.f32 %v877, %v881
      %v884 = vadd.f32 %v878, %v881
      %v885 = vld [vmem:[#allocation9] sm:$0xff]
      %v886 = vld [vmem:[#allocation9 + $0x8] sm:$0xff]
      %v887 = vadd.f32 %v883, %v885
      %v888 = vadd.f32 %v884, %v886
      %889 = vmax.xlane.f32.xlu0 %v887
      %v890 = vpop.xlane.xlu0 %889
      %891 = vmax.xlane.f32.xlu0 %v888
      %v892 = vpop.xlane.xlu0 %891
      %v893 = vlaneseq
      %v894 = vand.u32 %v893, 127
      %vm895 = vcmp.eq.f32.partialorder %v887, %v890
      %vm896 = vcmp.eq.f32.partialorder %v888, %v892
      %v897 = vsel %vm895, %v894, 128
      %v898 = vsel %vm896, %v894, 128
      %v899 = vand.u32 %v897, 65535
      %v900 = vshra.s32 %v897, 16
      %v901 = vcvt.s32.f32 %v899
      %v902 = vcvt.s32.f32 %v900
      %903 = vmin.xlane.f32.xlu0 %v902
      %v904 = vpop.xlane.xlu0 %903
      %vm905 = vcmp.eq.f32.partialorder %v902, %v904
      %v906 = vsel %vm905, %v901, inf
      %907 = vmin.xlane.f32.xlu0 %v906
      %v908 = vpop.xlane.xlu0 %907
      %v909 = vcvt.f32.s32 %v908
      %v910 = vcvt.f32.s32 %v904
      %v911 = vshll.u32 %v910, 16
      %v912 = vadd.s32 %v911, %v909
      %v913 = vand.u32 %v898, 65535
      %v914 = vshra.s32 %v898, 16
      %v915 = vcvt.s32.f32 %v913
      %v916 = vcvt.s32.f32 %v914
      %917 = vmin.xlane.f32.xlu0 %v916
      %v918 = vpop.xlane.xlu0 %917
      %vm919 = vcmp.eq.f32.partialorder %v916, %v918
      %v920 = vsel %vm919, %v915, inf
      %921 = vmin.xlane.f32.xlu0 %v920
      %v922 = vpop.xlane.xlu0 %921
      %v923 = vcvt.f32.s32 %v922
      %v924 = vcvt.f32.s32 %v918
      %v925 = vshll.u32 %v924, 16
      %v926 = vadd.s32 %v925, %v923
      %vm927 = vcmask 7168
      %928 = vst.msk [vmem:[%s5] sm:$0xff] %vm927, %v912
      %929 = vst.msk [vmem:[%s5 + $0x8] sm:$0xff] %vm927, %v926
      %vm930 = vcmp.eq.s32.totalorder %v894, %v912
      %vm931 = vcmp.eq.s32.totalorder %v894, %v926
      %v932 = vsel %vm930, 1, 0
      %v933 = vsel %vm931, 1, 0
      %v934 = vcvt.s32.f32 %v932
      %v935 = vcvt.s32.f32 %v933
      %936 = vmax.xlane.f32.xlu0 %v883
      %v937 = vpop.xlane.xlu0 %936
      %938 = vmax.xlane.f32.xlu0 %v884
      %v939 = vpop.xlane.xlu0 %938
      %v940 = vsub.f32 %v883, %v937
      %v941 = vsub.f32 %v884, %v939
      %v942 = vmul.f32 %v940, 1.442695
      %v943 = vpow.pop %v942
      %v944 = vmul.f32 %v941, 1.442695
      %v945 = vpow.pop %v944
      %946 = vadd.xlane.f32.xlu0 %v943
      %v947 = vpop.xlane.xlu0 %946
      %948 = vadd.xlane.f32.xlu0 %v945
      %v949 = vpop.xlane.xlu0 %948
      %v950 = vrcp.pop %v947
      %v951 = vmul.f32 %v947, %v950
      %v952 = vsub.f32 1.0, %v951
      %v953 = vmul.f32 %v950, %v952
      %v954 = vadd.f32 %v950, %v953
      %vm955 = vweird.f32 %v947
      %vm956 = vweird.f32 %v950
      %vm957 = vmor %vm955, %vm956
      %v958 = vsel %vm957, %v950, %v954
      %v959 = vand.u32 2147483647, %v947
      %vm960 = vcmp.eq.f32.partialorder %v959, 8.507059e+37
      %v961 = vand.u32 %v947, 2147483648
      %v962 = vor.u32 1.1754944e-38, %v961
      %v963 = vsel %vm960, %v962, %v958
      %v964 = vmul.f32 %v943, %v963
      %v965 = vrcp.pop %v949
      %v966 = vmul.f32 %v949, %v965
      %v967 = vsub.f32 1.0, %v966
      %v968 = vmul.f32 %v965, %v967
      %v969 = vadd.f32 %v965, %v968
      %vm970 = vweird.f32 %v949
      %vm971 = vweird.f32 %v965
      %vm972 = vmor %vm970, %vm971
      %v973 = vsel %vm972, %v965, %v969
      %v974 = vand.u32 2147483647, %v949
      %vm975 = vcmp.eq.f32.partialorder %v974, 8.507059e+37
      %v976 = vand.u32 %v949, 2147483648
      %v977 = vor.u32 1.1754944e-38, %v976
      %v978 = vsel %vm975, %v977, %v973
      %v979 = vmul.f32 %v945, %v978
      %v980 = vsub.f32 %v964, %v934
      %v981 = vsub.f32 %v979, %v935
      %v982 = vmul.f32 %v980, 0.0625
      %v983 = vmul.f32 %v981, 0.0625
      %984 = vmatpush.xpose.msra.mxu0 0.0
      %985 = vmatpush.xpose.msra.mxu0 0.0
      %986 = vmatpush.xpose.msra.mxu0 0.0
      %987 = vmatpush.xpose.msra.mxu0 0.0
      %988 = vmatpush.xpose.msra.mxu0 0.0
      %989 = vmatpush.xpose.msra.mxu0 0.0
      %990 = vmatpush.xpose.msra.mxu0 0.0
      %991 = vmatpush.xpose.msra.mxu0 0.0
      %992 = vmatpush.xpose.msra.mxu0 0.0
      %993 = vmatpush.xpose.msra.mxu0 0.0
      %994 = vmatpush.xpose.msra.mxu0 0.0
      %995 = vmatpush.xpose.msra.mxu0 0.0
      %996 = vmatpush.xpose.msra.mxu0 0.0
      %997 = vmatpush.xpose.msra.mxu0 0.0
      %998 = vmatpush.xpose.msra.mxu0 %v983
      %999 = vmatpush.xpose.msra.mxu0 %v982
      %1000 = vmatmul.f32.gmra.mxu0 %v982
      %v1001 = vpop.f32.mrf.mxu0
      %v1002 = vadd.f32 0.0, %v1001
      %1003 = vmatmul.f32.gmra.mxu0 %v983
      %v1004 = vpop.f32.mrf.mxu0
      %v1005 = vadd.f32 0.0, %v1004
      %1006 = vdwg.mxu0
      %v1007 = vld [vmem:[#allocation3] sm:$0xff]
      %v1008 = vld [vmem:[#allocation3 + $0x8] sm:$0xff]
      %v1009 = vmul.f32 %v1007, %v1002
      %v1010 = vmul.f32 %v1008, %v1005
      %v1011 = vsel %vm871, %v1009, 0.0
      %v1012 = vsel %vm871, %v1010, 0.0
      %v1013 = vadd.f32 %v1011, %v1012
      %1014 = vadd.xlane.f32.xlu0 %v1013
      %v1015 = vpop.xlane.xlu0 %1014
      %v1016 = vrot.slane %v1015, 4
      %v1017 = vadd.f32 %v1015, %v1016
      %v1018 = vrot.slane %v1017, 2
      %v1019 = vadd.f32 %v1017, %v1018
      %v1020 = vrot.slane %v1019, 1
      %v1021 = vadd.f32 %v1019, %v1020
      %s1022 = vtos %v1021
      %v1023 = vadd.f32 %v982, %v983
      %v1024 = vrot.slane %v1023, 4
      %v1025 = vadd.f32 %v1023, %v1024
      %v1026 = vrot.slane %v1025, 2
      %v1027 = vadd.f32 %v1025, %v1026
      %v1028 = vrot.slane %v1027, 1
      %v1029 = vadd.f32 %v1027, %v1028
      %v1030 = vmul.f32 %v1029, %v1029
      %vm1031 = vcmask 1040384
      %v1032 = vsel %vm1031, %v1030, 0.0
      %1033 = vadd.xlane.f32.xlu0 %v1032
      %v1034 = vpop.xlane.xlu0 %1033
      %v1035 = vrot.slane %v1034, 4
      %v1036 = vadd.f32 %v1034, %v1035
      %v1037 = vrot.slane %v1036, 2
      %v1038 = vadd.f32 %v1036, %v1037
      %v1039 = vrot.slane %v1038, 1
      %v1040 = vadd.f32 %v1038, %v1039
      %s1041 = vtos %v1040
      %vm1042 = vcmp.eq.s32.totalorder %v894, 0
      %vm1043 = vcmp.eq.s32.totalorder %v894, 1
      %v1044 = vstv %s1041
      %v1045 = vsel %vm1043, %v1044, 0.0
      %v1046 = vstv %s1022
      %v1047 = vsel %vm1042, %v1046, %v1045
      %1048 = vst [vmem:[#allocation10] sm:$0x1] %v1047
    $region37: #{tpu_custom_call.1} parent=1 // pred_fallthru
      _
    // Predicated region
    $region38: #{tpu_custom_call.1} parent=1 // pred_check
      _
    $region39: #{tpu_custom_call.1} parent=1 // pred_check_branch
      %1050 = sbr.rel (0) target = $region41
    $region40: #{tpu_custom_call.1} parent=1 // pred_region
      %1052 = vsyncadd [#allocation6], 0
      %s1054 = sshll.u32 [#allocation10], 4
      %s1055 = int_to_ptr.vmem [resolvable:$true] %s1054
      %s1056 = sshll.u32 %s4, 4
      %s1057 = int_to_ptr.hbm [resolvable:$true] %s1056
      %1059 = dma.vmem_to_hbm [thread:$0]  %s1055, 16, %s1057, [#allocation6]
    $region41: #{tpu_custom_call.1} parent=1 // pred_fallthru
      _
    // Predicated region
    $region42: #{tpu_custom_call.1} parent=1 // pred_check
      _
    $region43: #{tpu_custom_call.1} parent=1 // pred_check_branch
      %1061 = sbr.rel (0) target = $region45
    $region44: #{tpu_custom_call.1} parent=1 // pred_region
      _
    $region45: #{tpu_custom_call.1} parent=1 // pred_fallthru
      _
    // Predicated region
    $region46: #{tpu_custom_call.1} parent=1 // pred_check
      _
    $region47: #{tpu_custom_call.1} parent=1 // pred_check_branch
      %1063 = sbr.rel (0) target = $region49
    $region48: #{tpu_custom_call.1} parent=1 // pred_region
      %1065 = dma.done [#allocation6], 16
    $region49: #{tpu_custom_call.1} parent=1 // pred_fallthru
      _
    // Predicated region
    $region50: #{tpu_custom_call.1} parent=1 // pred_check
      _
    $region51: #{tpu_custom_call.1} parent=1 // pred_check_branch
      %1067 = sbr.rel (0) target = $region53
    $region52: #{tpu_custom_call.1} parent=1 // pred_region
      _
    $region53: #{tpu_custom_call.1} parent=1 // pred_fallthru
      _
    %1068 = vsyncpa [#allocation5], 1
    %1069 = vsyncpa [#allocation8], 1
    %1070 = vsyncpa [#allocation6], 1

</llo_original>
